<compile_context>
chip_gen: v7x
topology: tpu7x:2x2x1
jax: 0.10.0
libtpu: 0.0.40
codegen_flags: <defaults>
</compile_context>

<pallas_src>
import jax
import jax.numpy as jnp
from jax.experimental import pallas as pl
from jax.experimental.pallas import tpu as pltpu


# --------------------------------------------------------------------------- #
# Kernels
# --------------------------------------------------------------------------- #
def _fcn_resident_kernel(x_ref, w_ref, beta_ref, o_ref, y_ref):
    """All layers for one batch tile in a single grid step (weights resident).

    x_ref:    (bt, h)        bf16   flattened input tile
    w_ref:    (L, h, h)      bf16   full weight stack, (in, out) layout
    beta_ref: (h, out_pad)   bf16   zero-padded projection
    o_ref:    (bt, out_pad)  f32
    y_ref:    (bt, h)        bf16   activation scratch
    """
    num_layers = w_ref.shape[0]
    h = y_ref.shape[1]
    inv_sqrt_h = 1.0 / (h ** 0.5)

    y_ref[...] = x_ref[...]
    # L is a trace-time constant; each iteration is bounded by the y_ref round
    # trip so live ranges stay short even though this is a static Python loop.
    for l in range(num_layers):
        z = jnp.dot(y_ref[...], w_ref[l], preferred_element_type=jnp.float32)
        y_ref[...] = jnp.maximum(z * inv_sqrt_h, 0.0).astype(y_ref.dtype)

    out = jnp.dot(y_ref[...], beta_ref[...], preferred_element_type=jnp.float32)
    o_ref[...] = (out * (1.0 / h)).astype(o_ref.dtype)


def _fcn_stream_kernel(x_ref, w_ref, beta_ref, o_ref, y_ref):
    """One grid step == one FCN layer for one batch tile.

    grid = (nb, L).  The layer axis MUST stay the innermost ("arbitrary") axis:
    the bf16 activation scratch carries across layers of one batch tile, and
    o_ref is only written on the last layer step (its block index is constant
    across l, so Pallas defers the HBM writeback until the batch tile changes).
    """
    l = pl.program_id(1)
    num_layers = pl.num_programs(1)
    h = y_ref.shape[1]
    inv_sqrt_h = 1.0 / (h ** 0.5)

    # Layer 0: load this batch tile's flattened input into the scratch.
    @pl.when(l == 0)
    def _():
        y_ref[...] = x_ref[...]

    # Linear1d: y @ W.T / sqrt(h) then ReLU.  Weights were pre-transposed to
    # (in, out) in the wrapper, so this is a plain ((1,),(0,)) contraction —
    # no on-chip relayout of the (h, h) tile.
    w = w_ref[0]                                             # (h, h) bf16
    z = jnp.dot(y_ref[...], w, preferred_element_type=jnp.float32)
    y_ref[...] = jnp.maximum(z * inv_sqrt_h, 0.0).astype(y_ref.dtype)

    # Final projection on the last layer step: out = y @ beta / h.
    @pl.when(l == num_layers - 1)
    def _():
        out = jnp.dot(y_ref[...], beta_ref[...],
                      preferred_element_type=jnp.float32)
        o_ref[...] = (out * (1.0 / h)).astype(o_ref.dtype)


# --------------------------------------------------------------------------- #
# Wrapper helpers
# --------------------------------------------------------------------------- #
def _round_up(x, m):
    return ((x + m - 1) // m) * m


def _vmem_capacity_bytes():
    try:
        info = pltpu.get_tpu_info()
        cap = getattr(info, "vmem_capacity_bytes", None)
        if cap:
            return int(cap)
    except Exception:
        pass
    return 64 * 1024 * 1024          # conservative default (v7x per-TensorCore)


def _batch_tile_target():
    """Generation-aware target batch tile (rows amortizing each weight DMA)."""
    try:
        kind = jax.devices()[0].device_kind.lower()
    except Exception:
        return 512
    if "v6" in kind:
        return 640                    # worst compute:HBM ratio -> biggest tile
    if "v5" in kind:
        return 256                    # already at the v5e ridge point
    return 512                        # v7x / default


def _pick_batch_tile(B, b_target):
    """Raw (pre-VMEM-check) batch tile; multiple of 8 sublanes."""
    if B <= 256:
        return _round_up(max(B, 8), 8)
    if B <= 2 * b_target:
        # Two tiles so both v7x TensorCores get a "parallel" batch block.
        return _round_up(-(-B // 2), 8)
    return b_target


def _resident_vmem_bytes(bt, h, out_pad, L):
    return (2 * bt * h * 2            # x block (double-buffered bf16)
            + 2 * L * h * h * 2       # resident weight stack (conservative x2)
            + 2 * h * out_pad * 2     # beta block
            + 2 * bt * out_pad * 4    # out block (f32)
            + bt * h * 2)             # y scratch (bf16)


def _stream_vmem_bytes(bt, h, out_pad, L):
    return (2 * bt * h * 2            # x block
            + 2 * h * h * 2           # per-layer weight block (double-buffered)
            + 2 * h * out_pad * 2     # beta block
            + 2 * bt * out_pad * 4    # out block (f32)
            + bt * h * 2)             # y scratch (bf16)


# --------------------------------------------------------------------------- #
# Forward
# --------------------------------------------------------------------------- #
def fcn_forward(x, weights, beta, *, compute_dtype=jnp.bfloat16, b_tile=None,
                force_streaming=False):
    """x: (B, ...) flattened to (B, h); weights: (L, h, h) in PyTorch
    (out, in) layout; beta: (h, out_dim).  Returns (B, out_dim) f32.

    NOTE: activations are carried in bf16 between layers (same precision the
    MXU consumes); error compounds mildly with depth L.
    """
    B = x.shape[0]
    y = x.reshape(B, -1)                                   # x.flatten(1)
    L, h_out, h_in = weights.shape
    assert h_out == h_in and y.shape[1] == h_in, "weight / input feature mismatch"
    h = h_in
    out_dim = beta.shape[1]
    out_pad = _round_up(out_dim, 128)                      # lane-dense output

    # Wrapper-fused layout fixes (one HBM pass each):
    #  * weights -> (L, in, out) so the kernel contraction needs no on-chip
    #    transpose of the (h, h) tile.
    #  * beta zero-padded to 128 lanes -> unmasked full-width stores.
    w_t = jnp.swapaxes(weights, 1, 2).astype(compute_dtype)
    beta_p = jnp.zeros((h, out_pad), compute_dtype)
    beta_p = beta_p.at[:, :out_dim].set(beta.astype(compute_dtype))

    cap = _vmem_capacity_bytes()
    budget = int(cap * 0.85)

    bt = _round_up(b_tile, 8) if b_tile is not None else \
        _pick_batch_tile(B, _batch_tile_target())

    resident = (not force_streaming) and _resident_vmem_bytes(bt, h, out_pad, L) <= budget
    fits = _resident_vmem_bytes if resident else _stream_vmem_bytes
    while bt > 8 and fits(bt, h, out_pad, L) > budget:
        bt = _round_up(bt // 2, 8)
    # TODO(synk): if even bt==8 exceeds the budget (very large h on v7x), the
    # weight block needs N/K tiling; not implemented here.

    # Pad the batch to a tile multiple instead of asserting.
    B_pad = _round_up(B, bt)
    nb = B_pad // bt
    if B_pad != B:
        y = jnp.pad(y, ((0, B_pad - B), (0, 0)))
    y = y.astype(compute_dtype)

    needed = fits(bt, h, out_pad, L)
    vmem_limit = min(int(cap * 0.9), max(needed + (8 << 20), 32 << 20))

    if resident:
        out = pl.pallas_call(
            _fcn_resident_kernel,
            out_shape=jax.ShapeDtypeStruct((B_pad, out_pad), jnp.float32),
            grid_spec=pltpu.PrefetchScalarGridSpec(
                num_scalar_prefetch=0,
                grid=(nb,),
                in_specs=[
                    pl.BlockSpec((bt, h), lambda b: (b, 0)),
                    # Whole weight stack resident -> DMA'd once, reused by all
                    # batch tiles and all layers.
                    pl.BlockSpec((L, h, h), lambda b: (0, 0, 0)),
                    pl.BlockSpec((h, out_pad), lambda b: (0, 0)),
                ],
                out_specs=pl.BlockSpec((bt, out_pad), lambda b: (b, 0)),
                scratch_shapes=[pltpu.VMEM((bt, h), compute_dtype)],
            ),
            compiler_params=pltpu.CompilerParams(
                dimension_semantics=("parallel",),
                vmem_limit_bytes=vmem_limit,
            ),
        )(y, w_t, beta_p)
    else:
        out = pl.pallas_call(
            _fcn_stream_kernel,
            out_shape=jax.ShapeDtypeStruct((B_pad, out_pad), jnp.float32),
            grid_spec=pltpu.PrefetchScalarGridSpec(
                num_scalar_prefetch=0,
                grid=(nb, L),
                in_specs=[
                    # x: same block across layer steps -> DMA'd once per tile.
                    pl.BlockSpec((bt, h), lambda b, l: (b, 0)),
                    # Per-layer weight block; pipeline prefetches layer l+1.
                    pl.BlockSpec((1, h, h), lambda b, l: (l, 0, 0)),
                    pl.BlockSpec((h, out_pad), lambda b, l: (0, 0)),
                ],
                out_specs=pl.BlockSpec((bt, out_pad), lambda b, l: (b, 0)),
                scratch_shapes=[pltpu.VMEM((bt, h), compute_dtype)],
            ),
            compiler_params=pltpu.CompilerParams(
                # Layer axis must stay innermost + "arbitrary" (activation
                # scratch / deferred output writeback depend on it).
                dimension_semantics=("parallel", "arbitrary"),
                vmem_limit_bytes=vmem_limit,
            ),
        )(y, w_t, beta_p)

    return out[:B, :out_dim]


def fcn_reference(x, weights, beta):
    """Pure-JAX f32 reference mirroring the PyTorch forward."""
    B = x.shape[0]
    y = x.reshape(B, -1).astype(jnp.float32)
    h = weights.shape[1]
    for l in range(weights.shape[0]):
        y = jnp.maximum(y @ weights[l].T / (h ** 0.5), 0.0)
    return y @ beta / float(h)


# --------------------------------------------------------------------------- #
# Demo / self-test
# --------------------------------------------------------------------------- #
if __name__ == "__main__":
    key = jax.random.PRNGKey(0)

    # --- Test 1: resident-weights path, FCN(h=32, out_dim=4, num_layers=3) ---
    B, C, H, W = 8, 2, 4, 4                        # flatten(1) -> h = 32
    h, out_dim, num_layers = C * H * W, 4, 3
    k1, k2, k3, key = jax.random.split(key, 4)
    x = jax.random.normal(k1, (B, C, H, W), dtype=jnp.float32)
    weights = jax.random.normal(k2, (num_layers, h, h), dtype=jnp.float32)
    beta = jax.random.normal(k3, (h, out_dim), dtype=jnp.float32)
    # TODO(synk): bias=False path only (module default); bias would be a
    # trivial `+ 0.1 * bias` after the dot.

    out = jax.block_until_ready(fcn_forward(x, weights, beta))
    ref = fcn_reference(x, weights, beta)
    assert out.shape == (B, out_dim)
    assert jnp.allclose(out, ref, atol=5e-2, rtol=5e-2), (out, ref)

    # --- Test 2: streaming (per-layer weight) path, odd batch (padding) ------
    B2, C2, H2, W2 = 13, 4, 8, 8                   # flatten(1) -> h = 256
    h2, out2, L2 = C2 * H2 * W2, 8, 2
    k1, k2, k3, key = jax.random.split(key, 4)
    x2 = jax.random.normal(k1, (B2, C2, H2, W2), dtype=jnp.float32)
    w2 = jax.random.normal(k2, (L2, h2, h2), dtype=jnp.float32)
    b2 = jax.random.normal(k3, (h2, out2), dtype=jnp.float32)

    out2_k = jax.block_until_ready(fcn_forward(x2, w2, b2, force_streaming=True))
    ref2 = fcn_reference(x2, w2, b2)
    assert out2_k.shape == (B2, out2)
    assert jnp.allclose(out2_k, ref2, atol=5e-2, rtol=5e-2), (out2_k, ref2)

    print("KERNEL_OK")
</pallas_src>

<mosaic_0001>
module attributes {stable_mosaic.version = 11 : i64} {
  func.func @_fcn_resident_kernel(%arg0: i32, %arg1: memref<8x32xbf16, #tpu.memory_space<vmem>>, %arg2: memref<3x32x32xbf16, #tpu.memory_space<vmem>>, %arg3: memref<32x128xbf16, #tpu.memory_space<vmem>>, %arg4: memref<8x128xf32, #tpu.memory_space<vmem>>, %arg5: memref<8x32xbf16, #tpu.memory_space<vmem>>) attributes {dimension_semantics = [#tpu.dimension_semantics<parallel>], iteration_bounds = array<i64: 1>, scalar_prefetch = 0 : i64, scratch_operands = 1 : i64, tpu.core_type = #tpu.core_type<tc>, window_params = [{transform_indices = @transform_0, window_bounds = array<i64: 8, 32>}, {pipeline_mode = #tpu.pipeline_mode<synchronous>, transform_indices = @transform_1, window_bounds = array<i64: 3, 32, 32>}, {pipeline_mode = #tpu.pipeline_mode<synchronous>, transform_indices = @transform_2, window_bounds = array<i64: 32, 128>}, {transform_indices = @transform_3, window_bounds = array<i64: 8, 128>}]} {
    %c0 = arith.constant 0 : index
    %c0_0 = arith.constant 0 : index
    %0 = vector.load %arg1[%c0, %c0_0] : memref<8x32xbf16, #tpu.memory_space<vmem>>, vector<8x32xbf16>
    %c0_1 = arith.constant 0 : index
    %c0_2 = arith.constant 0 : index
    %1 = vector.load %arg5[%c0_1, %c0_2] : memref<8x32xbf16, #tpu.memory_space<vmem>>, vector<8x32xbf16>
    tpu.vector_store %arg5[%c0_1, %c0_2], %0 {strides = array<i32>} : memref<8x32xbf16, #tpu.memory_space<vmem>>, vector<8x32xbf16>,
    %c0_3 = arith.constant 0 : index
    %c0_4 = arith.constant 0 : index
    %2 = vector.load %arg5[%c0_3, %c0_4] : memref<8x32xbf16, #tpu.memory_space<vmem>>, vector<8x32xbf16>
    %c0_5 = arith.constant 0 : index
    %c0_6 = arith.constant 0 : index
    %c0_7 = arith.constant 0 : index
    %3 = vector.load %arg2[%c0_5, %c0_6, %c0_7] : memref<3x32x32xbf16, #tpu.memory_space<vmem>>, vector<1x32x32xbf16>
    %4 = vector.shape_cast %3 : vector<1x32x32xbf16> to vector<32x32xbf16>
    %cst = arith.constant dense<0.000000e+00> : vector<8x32xf32>
    %5 = tpu.matmul %2, %4, %cst {dimension_numbers = #tpu.dot_dimension_numbers<[1], [0], [0], [1], [0, 0, 1, 1], [], []>} : vector<8x32xbf16>, vector<32x32xbf16>, vector<8x32xf32> -> vector<8x32xf32>
    %cst_8 = arith.constant 0.176776692 : f32
    %6 = vector.broadcast %cst_8 : f32 to vector<8x32xf32>
    %7 = arith.mulf %5, %6 : vector<8x32xf32>
    %cst_9 = arith.constant 0.000000e+00 : f32
    %8 = vector.broadcast %cst_9 : f32 to vector<8x32xf32>
    %9 = arith.maximumf %7, %8 : vector<8x32xf32>
    %10 = arith.truncf %9 : vector<8x32xf32> to vector<8x32xbf16>
    %c0_10 = arith.constant 0 : index
    %c0_11 = arith.constant 0 : index
    %11 = vector.load %arg5[%c0_10, %c0_11] : memref<8x32xbf16, #tpu.memory_space<vmem>>, vector<8x32xbf16>
    tpu.vector_store %arg5[%c0_10, %c0_11], %10 {strides = array<i32>} : memref<8x32xbf16, #tpu.memory_space<vmem>>, vector<8x32xbf16>,
    %c0_12 = arith.constant 0 : index
    %c0_13 = arith.constant 0 : index
    %12 = vector.load %arg5[%c0_12, %c0_13] : memref<8x32xbf16, #tpu.memory_space<vmem>>, vector<8x32xbf16>
    %c1 = arith.constant 1 : index
    %c0_14 = arith.constant 0 : index
    %c0_15 = arith.constant 0 : index
    %13 = vector.load %arg2[%c1, %c0_14, %c0_15] : memref<3x32x32xbf16, #tpu.memory_space<vmem>>, vector<1x32x32xbf16>
    %14 = vector.shape_cast %13 : vector<1x32x32xbf16> to vector<32x32xbf16>
    %cst_16 = arith.constant dense<0.000000e+00> : vector<8x32xf32>
    %15 = tpu.matmul %12, %14, %cst_16 {dimension_numbers = #tpu.dot_dimension_numbers<[1], [0], [0], [1], [0, 0, 1, 1], [], []>} : vector<8x32xbf16>, vector<32x32xbf16>, vector<8x32xf32> -> vector<8x32xf32>
    %cst_17 = arith.constant 0.176776692 : f32
    %16 = vector.broadcast %cst_17 : f32 to vector<8x32xf32>
    %17 = arith.mulf %15, %16 : vector<8x32xf32>
    %cst_18 = arith.constant 0.000000e+00 : f32
    %18 = vector.broadcast %cst_18 : f32 to vector<8x32xf32>
    %19 = arith.maximumf %17, %18 : vector<8x32xf32>
    %20 = arith.truncf %19 : vector<8x32xf32> to vector<8x32xbf16>
    %c0_19 = arith.constant 0 : index
    %c0_20 = arith.constant 0 : index
    %21 = vector.load %arg5[%c0_19, %c0_20] : memref<8x32xbf16, #tpu.memory_space<vmem>>, vector<8x32xbf16>
    tpu.vector_store %arg5[%c0_19, %c0_20], %20 {strides = array<i32>} : memref<8x32xbf16, #tpu.memory_space<vmem>>, vector<8x32xbf16>,
    %c0_21 = arith.constant 0 : index
    %c0_22 = arith.constant 0 : index
    %22 = vector.load %arg5[%c0_21, %c0_22] : memref<8x32xbf16, #tpu.memory_space<vmem>>, vector<8x32xbf16>
    %c2 = arith.constant 2 : index
    %c0_23 = arith.constant 0 : index
    %c0_24 = arith.constant 0 : index
    %23 = vector.load %arg2[%c2, %c0_23, %c0_24] : memref<3x32x32xbf16, #tpu.memory_space<vmem>>, vector<1x32x32xbf16>
    %24 = vector.shape_cast %23 : vector<1x32x32xbf16> to vector<32x32xbf16>
    %cst_25 = arith.constant dense<0.000000e+00> : vector<8x32xf32>
    %25 = tpu.matmul %22, %24, %cst_25 {dimension_numbers = #tpu.dot_dimension_numbers<[1], [0], [0], [1], [0, 0, 1, 1], [], []>} : vector<8x32xbf16>, vector<32x32xbf16>, vector<8x32xf32> -> vector<8x32xf32>
    %cst_26 = arith.constant 0.176776692 : f32
    %26 = vector.broadcast %cst_26 : f32 to vector<8x32xf32>
    %27 = arith.mulf %25, %26 : vector<8x32xf32>
    %cst_27 = arith.constant 0.000000e+00 : f32
    %28 = vector.broadcast %cst_27 : f32 to vector<8x32xf32>
    %29 = arith.maximumf %27, %28 : vector<8x32xf32>
    %30 = arith.truncf %29 : vector<8x32xf32> to vector<8x32xbf16>
    %c0_28 = arith.constant 0 : index
    %c0_29 = arith.constant 0 : index
    %31 = vector.load %arg5[%c0_28, %c0_29] : memref<8x32xbf16, #tpu.memory_space<vmem>>, vector<8x32xbf16>
    tpu.vector_store %arg5[%c0_28, %c0_29], %30 {strides = array<i32>} : memref<8x32xbf16, #tpu.memory_space<vmem>>, vector<8x32xbf16>,
    %c0_30 = arith.constant 0 : index
    %c0_31 = arith.constant 0 : index
    %32 = vector.load %arg5[%c0_30, %c0_31] : memref<8x32xbf16, #tpu.memory_space<vmem>>, vector<8x32xbf16>
    %c0_32 = arith.constant 0 : index
    %c0_33 = arith.constant 0 : index
    %33 = vector.load %arg3[%c0_32, %c0_33] : memref<32x128xbf16, #tpu.memory_space<vmem>>, vector<32x128xbf16>
    %cst_34 = arith.constant dense<0.000000e+00> : vector<8x128xf32>
    %34 = tpu.matmul %32, %33, %cst_34 {dimension_numbers = #tpu.dot_dimension_numbers<[1], [0], [0], [1], [0, 0, 1, 1], [], []>} : vector<8x32xbf16>, vector<32x128xbf16>, vector<8x128xf32> -> vector<8x128xf32>
    %cst_35 = arith.constant 3.125000e-02 : f32
    %35 = vector.broadcast %cst_35 : f32 to vector<8x128xf32>
    %36 = arith.mulf %34, %35 : vector<8x128xf32>
    %c0_36 = arith.constant 0 : index
    %c0_37 = arith.constant 0 : index
    %37 = vector.load %arg4[%c0_36, %c0_37] : memref<8x128xf32, #tpu.memory_space<vmem>>, vector<8x128xf32>
    tpu.vector_store %arg4[%c0_36, %c0_37], %36 {strides = array<i32>} : memref<8x128xf32, #tpu.memory_space<vmem>>, vector<8x128xf32>,
    return
  }
  func.func @transform_0(%arg0: i32) -> (i32, i32) {
    %c0_i32 = arith.constant 0 : i32
    %c0_i32_0 = arith.constant 0 : i32
    return %arg0, %c0_i32 : i32, i32
  }
  func.func @transform_1(%arg0: i32) -> (i32, i32, i32) {
    %c0_i32 = arith.constant 0 : i32
    %c0_i32_0 = arith.constant 0 : i32
    %c0_i32_1 = arith.constant 0 : i32
    %c0_i32_2 = arith.constant 0 : i32
    return %c0_i32, %c0_i32_0, %c0_i32_1 : i32, i32, i32
  }
  func.func @transform_2(%arg0: i32) -> (i32, i32) {
    %c0_i32 = arith.constant 0 : i32
    %c0_i32_0 = arith.constant 0 : i32
    %c0_i32_1 = arith.constant 0 : i32
    return %c0_i32, %c0_i32_0 : i32, i32
  }
  func.func @transform_3(%arg0: i32) -> (i32, i32) {
    %c0_i32 = arith.constant 0 : i32
    %c0_i32_0 = arith.constant 0 : i32
    return %arg0, %c0_i32 : i32, i32
  }
}

</mosaic_0001>

<llo_original>
// kernel: tpu_custom_call.1
$region0: #{tpu_custom_call.1}
  #allocation0 [shape = 'u32[]', space=smem, size = 0x4, offset = 0x4, fixed_abs, tag = 'smem constant byte address 0x4 - core index']
  #allocation1 [shape = 'u32[144,128]{1,0:T(1,128)}', space=vmem, size = 0x12000, scoped, tag = 'internal scratch']
  #allocation2 [shape = 'bf16[8,32]{1,0:T(8,128)(2,1)}', space=vmem, size = 0x800, scoped, tag = 'scratch operand']
  %s0 = inlined_call_operand.hbm [shape: bf16[8,32], index: 0, kind: input, shape index: {}]
  %s1 = inlined_call_operand.hbm [shape: bf16[3,32,32], index: 1, kind: input, shape index: {}]
  %s2 = inlined_call_operand.hbm [shape: bf16[32,128], index: 2, kind: input, shape index: {}]
  %s3 = inlined_call_operand.hbm [shape: f32[8,128], index: 3, kind: output, shape index: {}]
  %s4 = sld [smem:[#allocation0]]
  $region34: #{tpu_custom_call.1} parent=0
    _
  %s6 = ssub.s32 1, %s4
  %s7 = scalar_select 0, %s6, %s4
  $region1: #{tpu_custom_call.1} parent=0
    #allocation3 [shape = 'u8[2048]{0}', space=vmem, size = 0x800, scoped, tag = 'input window, operand 0, single buffered']
    #allocation4 [shape = 's32[1]{0}', space=sflag, size = 0x4, scoped, tag = 'scoped memory for tpu_custom_call.1']
    #allocation5 [shape = 's32[1]{0}', space=sflag, size = 0x4, scoped, tag = 'scoped memory for tpu_custom_call.1']
    #allocation6 [shape = 'u8[24576]{0}', space=vmem, size = 0x6000, scoped, tag = 'input window, operand 1, single buffered']
    #allocation7 [shape = 's32[1]{0}', space=sflag, size = 0x4, scoped, tag = 'scoped memory for tpu_custom_call.1']
    #allocation8 [shape = 'u8[8192]{0}', space=vmem, size = 0x2000, scoped, tag = 'input window, operand 2, single buffered']
    #allocation9 [shape = 'u8[4096]{0}', space=vmem, size = 0x1000, scoped, tag = 'output window, operand 0, single buffered']
    %8 = vsyncpa [#allocation4], 0
    %9 = vsyncpa [#allocation7], 0
    %10 = vsyncpa [#allocation5], 0
    // Predicated region
    $region2: #{tpu_custom_call.1} parent=1 // pred_check
      _
    $region3: #{tpu_custom_call.1} parent=1 // pred_check_branch
      %12 = sbr.rel (0) target = $region5
    $region4: #{tpu_custom_call.1} parent=1 // pred_region
      %s14 = ssub.s32 64, 64
      %15 = vsyncadd [#allocation4], %s14
      %s17 = sshll.u32 [#allocation3], 4
      %s18 = int_to_ptr.vmem [resolvable:$true] %s17
      %20 = dma.hbm_to_vmem [thread:$0]  %s0, 64, %s18, [#allocation4]
    $region5: #{tpu_custom_call.1} parent=1 // pred_fallthru
      _
    // Predicated region
    $region6: #{tpu_custom_call.1} parent=1 // pred_check
      _
    $region7: #{tpu_custom_call.1} parent=1 // pred_check_branch
      %22 = sbr.rel (0) target = $region9
    $region8: #{tpu_custom_call.1} parent=1 // pred_region
      %s24 = ssub.s32 768, 768
      %25 = vsyncadd [#allocation7], %s24
      %s26 = sshll.u32 [#allocation6], 4
      %s27 = int_to_ptr.vmem [resolvable:$true] %s26
      %32 = dma.hbm_to_vmem [thread:$0]  %s1, 768, %s27, [#allocation7], 64, 64, 4
    $region9: #{tpu_custom_call.1} parent=1 // pred_fallthru
      _
    // Predicated region
    $region10: #{tpu_custom_call.1} parent=1 // pred_check
      _
    $region11: #{tpu_custom_call.1} parent=1 // pred_check_branch
      %34 = sbr.rel (0) target = $region13
    $region12: #{tpu_custom_call.1} parent=1 // pred_region
      %s36 = ssub.s32 256, 256
      %37 = vsyncadd [#allocation7], %s36
      %s38 = sshll.u32 [#allocation8], 4
      %s39 = int_to_ptr.vmem [resolvable:$true] %s38
      %44 = dma.hbm_to_vmem [thread:$0]  %s2, 256, %s39, [#allocation7], 64, 64, 4
    $region13: #{tpu_custom_call.1} parent=1 // pred_fallthru
      _
    // Predicated region
    $region14: #{tpu_custom_call.1} parent=1 // pred_check
      _
    $region15: #{tpu_custom_call.1} parent=1 // pred_check_branch
      %46 = sbr.rel (0) target = $region17
    $region16: #{tpu_custom_call.1} parent=1 // pred_region
      %47 = dma.done [#allocation4], 64
    $region17: #{tpu_custom_call.1} parent=1 // pred_fallthru
      _
    // Predicated region
    $region18: #{tpu_custom_call.1} parent=1 // pred_check
      _
    $region19: #{tpu_custom_call.1} parent=1 // pred_check_branch
      %49 = sbr.rel (0) target = $region21
    $region20: #{tpu_custom_call.1} parent=1 // pred_region
      %50 = dma.done [#allocation7], 768
    $region21: #{tpu_custom_call.1} parent=1 // pred_fallthru
      _
    // Predicated region
    $region22: #{tpu_custom_call.1} parent=1 // pred_check
      _
    $region23: #{tpu_custom_call.1} parent=1 // pred_check_branch
      %52 = sbr.rel (0) target = $region25
    $region24: #{tpu_custom_call.1} parent=1 // pred_region
      %53 = dma.done [#allocation7], 256
    $region25: #{tpu_custom_call.1} parent=1 // pred_fallthru
      _
    %v55 = vld [vmem:[#allocation3] sm:$0xf]
    %vm56 = vcmask 257024
    %57 = vst.msk [vmem:[#allocation2] sm:$0xf] %vm56, %v55
    %v58 = vld [vmem:[#allocation2] sm:$0xf]
    %v59 = vld [vmem:[#allocation6] sm:$0xf]
    %v60 = vld [vmem:[#allocation6 + $0x4] sm:$0xf]
    %v61 = vld [vmem:[#allocation6 + $0x8] sm:$0xf]
    %v62 = vld [vmem:[#allocation6 + $0xc] sm:$0xf]
    %v67 = vunpack.c.l.b16 %v59
    %v68 = vunpack.c.l.b16 %v60
    %v69 = vunpack.c.l.b16 %v61
    %v70 = vunpack.c.l.b16 %v62
    %v71 = vpack.c.b16 %v68, %v67
    %v72 = vpack.c.b16 %v70, %v69
    %vm75 = vcmask 261120
    %v77 = vsel %vm75, %v58, 0
    %79 = vmatprep.subr.bf16.mxu0 0
    %80 = vmatpush1.bf16.msra.mxu0 %v71
    %81 = vmatprep.subr.bf16.mxu0 0
    %82 = vmatpush1.bf16.msra.mxu0 %v72
    %83 = vmatprep.subr.bf16.mxu0 0
    %84 = vmatpush1.bf16.msra.mxu0 0
    %85 = vmatprep.subr.bf16.mxu0 0
    %86 = vmatpush1.bf16.msra.mxu0 0
    %87 = vmatprep.subr.bf16.mxu0 0
    %88 = vmatpush1.bf16.msra.mxu0 0
    %89 = vmatprep.subr.bf16.mxu0 0
    %90 = vmatpush1.bf16.msra.mxu0 0
    %91 = vmatprep.subr.bf16.mxu0 0
    %92 = vmatpush1.bf16.msra.mxu0 0
    %93 = vmatprep.subr.bf16.mxu0 0
    %94 = vmatpush1.bf16.msra.mxu0 0
    %95 = vmatprep.subr.bf16.mxu0 0
    %96 = vmatpush1.bf16.msra.mxu0 0
    %97 = vmatprep.subr.bf16.mxu0 0
    %98 = vmatpush1.bf16.msra.mxu0 0
    %99 = vmatprep.subr.bf16.mxu0 0
    %100 = vmatpush1.bf16.msra.mxu0 0
    %101 = vmatprep.subr.bf16.mxu0 0
    %102 = vmatpush1.bf16.msra.mxu0 0
    %103 = vmatprep.subr.bf16.mxu0 0
    %104 = vmatpush1.bf16.msra.mxu0 0
    %105 = vmatprep.subr.bf16.mxu0 0
    %106 = vmatpush1.bf16.msra.mxu0 0
    %107 = vmatprep.subr.bf16.mxu0 0
    %108 = vmatpush1.bf16.msra.mxu0 0
    %109 = vmatprep.subr.bf16.mxu0 0
    %110 = vmatpush1.bf16.msra.mxu0 0
    %111 = vmatprep.mubr.bf16.mxu0 0
    %112 = vmatmul.mubr.bf16.gmra.mrb[0].mxu0 %v77
    %v113 = vpop.f32.mrb[0].mxu0
    %v114 = vadd.f32 0.0, %v113
    %v115 = vpop.f32.mrb[0].mxu0
    %v116 = vpop.f32.mrb[0].mxu0
    %v117 = vpop.f32.mrb[0].mxu0
    %118 = vdwg.mxu0
    %v119 = vmul.f32 %v114, 0.17677669
    %v120 = vmax.f32 %v119, 0.0
    %v121 = vpack.c.bf16 %v120, %v120
    %122 = vst.msk [vmem:[#allocation2] sm:$0xf] %vm56, %v121
    %v123 = vld [vmem:[#allocation2] sm:$0xf]
    %s124 = scalar_lea.vmem [#allocation6], 16
    %v125 = vld [vmem:[%s124] sm:$0xf]
    %v126 = vld [vmem:[%s124 + $0x4] sm:$0xf]
    %v127 = vld [vmem:[%s124 + $0x8] sm:$0xf]
    %v128 = vld [vmem:[%s124 + $0xc] sm:$0xf]
    %v133 = vunpack.c.l.b16 %v125
    %v134 = vunpack.c.l.b16 %v126
    %v135 = vunpack.c.l.b16 %v127
    %v136 = vunpack.c.l.b16 %v128
    %v137 = vpack.c.b16 %v134, %v133
    %v138 = vpack.c.b16 %v136, %v135
    %v142 = vsel %vm75, %v123, 0
    %144 = vmatprep.subr.bf16.mxu0 0
    %145 = vmatpush1.bf16.msra.mxu0 %v137
    %146 = vmatprep.subr.bf16.mxu0 0
    %147 = vmatpush1.bf16.msra.mxu0 %v138
    %148 = vmatprep.subr.bf16.mxu0 0
    %149 = vmatpush1.bf16.msra.mxu0 0
    %150 = vmatprep.subr.bf16.mxu0 0
    %151 = vmatpush1.bf16.msra.mxu0 0
    %152 = vmatprep.subr.bf16.mxu0 0
    %153 = vmatpush1.bf16.msra.mxu0 0
    %154 = vmatprep.subr.bf16.mxu0 0
    %155 = vmatpush1.bf16.msra.mxu0 0
    %156 = vmatprep.subr.bf16.mxu0 0
    %157 = vmatpush1.bf16.msra.mxu0 0
    %158 = vmatprep.subr.bf16.mxu0 0
    %159 = vmatpush1.bf16.msra.mxu0 0
    %160 = vmatprep.subr.bf16.mxu0 0
    %161 = vmatpush1.bf16.msra.mxu0 0
    %162 = vmatprep.subr.bf16.mxu0 0
    %163 = vmatpush1.bf16.msra.mxu0 0
    %164 = vmatprep.subr.bf16.mxu0 0
    %165 = vmatpush1.bf16.msra.mxu0 0
    %166 = vmatprep.subr.bf16.mxu0 0
    %167 = vmatpush1.bf16.msra.mxu0 0
    %168 = vmatprep.subr.bf16.mxu0 0
    %169 = vmatpush1.bf16.msra.mxu0 0
    %170 = vmatprep.subr.bf16.mxu0 0
    %171 = vmatpush1.bf16.msra.mxu0 0
    %172 = vmatprep.subr.bf16.mxu0 0
    %173 = vmatpush1.bf16.msra.mxu0 0
    %174 = vmatprep.subr.bf16.mxu0 0
    %175 = vmatpush1.bf16.msra.mxu0 0
    %176 = vmatprep.mubr.bf16.mxu0 0
    %177 = vmatmul.mubr.bf16.gmra.mrb[0].mxu0 %v142
    %v178 = vpop.f32.mrb[0].mxu0
    %v179 = vadd.f32 0.0, %v178
    %v180 = vpop.f32.mrb[0].mxu0
    %v181 = vpop.f32.mrb[0].mxu0
    %v182 = vpop.f32.mrb[0].mxu0
    %183 = vdwg.mxu0
    %v184 = vmul.f32 %v179, 0.17677669
    %v185 = vmax.f32 %v184, 0.0
    %v186 = vpack.c.bf16 %v185, %v185
    %187 = vst.msk [vmem:[#allocation2] sm:$0xf] %vm56, %v186
    %v188 = vld [vmem:[#allocation2] sm:$0xf]
    %s189 = scalar_lea.vmem [#allocation6], 32
    %v190 = vld [vmem:[%s189] sm:$0xf]
    %v191 = vld [vmem:[%s189 + $0x4] sm:$0xf]
    %v192 = vld [vmem:[%s189 + $0x8] sm:$0xf]
    %v193 = vld [vmem:[%s189 + $0xc] sm:$0xf]
    %v198 = vunpack.c.l.b16 %v190
    %v199 = vunpack.c.l.b16 %v191
    %v200 = vunpack.c.l.b16 %v192
    %v201 = vunpack.c.l.b16 %v193
    %v202 = vpack.c.b16 %v199, %v198
    %v203 = vpack.c.b16 %v201, %v200
    %v207 = vsel %vm75, %v188, 0
    %209 = vmatprep.subr.bf16.mxu0 0
    %210 = vmatpush1.bf16.msra.mxu0 %v202
    %211 = vmatprep.subr.bf16.mxu0 0
    %212 = vmatpush1.bf16.msra.mxu0 %v203
    %213 = vmatprep.subr.bf16.mxu0 0
    %214 = vmatpush1.bf16.msra.mxu0 0
    %215 = vmatprep.subr.bf16.mxu0 0
    %216 = vmatpush1.bf16.msra.mxu0 0
    %217 = vmatprep.subr.bf16.mxu0 0
    %218 = vmatpush1.bf16.msra.mxu0 0
    %219 = vmatprep.subr.bf16.mxu0 0
    %220 = vmatpush1.bf16.msra.mxu0 0
    %221 = vmatprep.subr.bf16.mxu0 0
    %222 = vmatpush1.bf16.msra.mxu0 0
    %223 = vmatprep.subr.bf16.mxu0 0
    %224 = vmatpush1.bf16.msra.mxu0 0
    %225 = vmatprep.subr.bf16.mxu0 0
    %226 = vmatpush1.bf16.msra.mxu0 0
    %227 = vmatprep.subr.bf16.mxu0 0
    %228 = vmatpush1.bf16.msra.mxu0 0
    %229 = vmatprep.subr.bf16.mxu0 0
    %230 = vmatpush1.bf16.msra.mxu0 0
    %231 = vmatprep.subr.bf16.mxu0 0
    %232 = vmatpush1.bf16.msra.mxu0 0
    %233 = vmatprep.subr.bf16.mxu0 0
    %234 = vmatpush1.bf16.msra.mxu0 0
    %235 = vmatprep.subr.bf16.mxu0 0
    %236 = vmatpush1.bf16.msra.mxu0 0
    %237 = vmatprep.subr.bf16.mxu0 0
    %238 = vmatpush1.bf16.msra.mxu0 0
    %239 = vmatprep.subr.bf16.mxu0 0
    %240 = vmatpush1.bf16.msra.mxu0 0
    %241 = vmatprep.mubr.bf16.mxu0 0
    %242 = vmatmul.mubr.bf16.gmra.mrb[0].mxu0 %v207
    %v243 = vpop.f32.mrb[0].mxu0
    %v244 = vadd.f32 0.0, %v243
    %v245 = vpop.f32.mrb[0].mxu0
    %v246 = vpop.f32.mrb[0].mxu0
    %v247 = vpop.f32.mrb[0].mxu0
    %248 = vdwg.mxu0
    %v249 = vmul.f32 %v244, 0.17677669
    %v250 = vmax.f32 %v249, 0.0
    %v251 = vpack.c.bf16 %v250, %v250
    %252 = vst.msk [vmem:[#allocation2] sm:$0xf] %vm56, %v251
    %v253 = vld [vmem:[#allocation2] sm:$0xf]
    %v254 = vld [vmem:[#allocation8] sm:$0xf]
    %v255 = vld [vmem:[#allocation8 + $0x4] sm:$0xf]
    %v256 = vld [vmem:[#allocation8 + $0x8] sm:$0xf]
    %v257 = vld [vmem:[#allocation8 + $0xc] sm:$0xf]
    %v262 = vunpack.c.l.b16 %v254
    %v263 = vunpack.c.l.b16 %v255
    %v264 = vunpack.c.l.b16 %v256
    %v265 = vunpack.c.l.b16 %v257
    %v266 = vpack.c.b16 %v263, %v262
    %v267 = vpack.c.b16 %v265, %v264
    %v271 = vsel %vm75, %v253, 0
    %273 = vmatprep.subr.bf16.mxu0 0
    %274 = vmatpush1.bf16.msra.mxu0 %v266
    %275 = vmatprep.subr.bf16.mxu0 0
    %276 = vmatpush1.bf16.msra.mxu0 %v267
    %277 = vmatprep.subr.bf16.mxu0 0
    %278 = vmatpush1.bf16.msra.mxu0 0
    %279 = vmatprep.subr.bf16.mxu0 0
    %280 = vmatpush1.bf16.msra.mxu0 0
    %281 = vmatprep.subr.bf16.mxu0 0
    %282 = vmatpush1.bf16.msra.mxu0 0
    %283 = vmatprep.subr.bf16.mxu0 0
    %284 = vmatpush1.bf16.msra.mxu0 0
    %285 = vmatprep.subr.bf16.mxu0 0
    %286 = vmatpush1.bf16.msra.mxu0 0
    %287 = vmatprep.subr.bf16.mxu0 0
    %288 = vmatpush1.bf16.msra.mxu0 0
    %289 = vmatprep.subr.bf16.mxu0 0
    %290 = vmatpush1.bf16.msra.mxu0 0
    %291 = vmatprep.subr.bf16.mxu0 0
    %292 = vmatpush1.bf16.msra.mxu0 0
    %293 = vmatprep.subr.bf16.mxu0 0
    %294 = vmatpush1.bf16.msra.mxu0 0
    %295 = vmatprep.subr.bf16.mxu0 0
    %296 = vmatpush1.bf16.msra.mxu0 0
    %297 = vmatprep.subr.bf16.mxu0 0
    %298 = vmatpush1.bf16.msra.mxu0 0
    %299 = vmatprep.subr.bf16.mxu0 0
    %300 = vmatpush1.bf16.msra.mxu0 0
    %301 = vmatprep.subr.bf16.mxu0 0
    %302 = vmatpush1.bf16.msra.mxu0 0
    %303 = vmatprep.subr.bf16.mxu0 0
    %304 = vmatpush1.bf16.msra.mxu0 0
    %305 = vmatprep.mubr.bf16.mxu0 0
    %306 = vmatmul.mubr.bf16.gmra.mrb[0].mxu0 %v271
    %v307 = vpop.f32.mrb[0].mxu0
    %v308 = vadd.f32 0.0, %v307
    %v309 = vpop.f32.mrb[0].mxu0
    %v310 = vpop.f32.mrb[0].mxu0
    %v311 = vpop.f32.mrb[0].mxu0
    %312 = vdwg.mxu0
    %v313 = vmul.f32 %v308, 0.03125
    %314 = vst [vmem:[#allocation9] sm:$0xff] %v313
    // Predicated region
    $region26: #{tpu_custom_call.1} parent=1 // pred_check
      _
    $region27: #{tpu_custom_call.1} parent=1 // pred_check_branch
      %316 = sbr.rel (0) target = $region29
    $region28: #{tpu_custom_call.1} parent=1 // pred_region
      %s318 = ssub.s32 128, 128
      %319 = vsyncadd [#allocation5], %s318
      %s321 = sshll.u32 [#allocation9], 4
      %s322 = int_to_ptr.vmem [resolvable:$true] %s321
      %324 = dma.vmem_to_hbm [thread:$0]  %s322, 128, %s3, [#allocation5]
    $region29: #{tpu_custom_call.1} parent=1 // pred_fallthru
      _
    // Predicated region
    $region30: #{tpu_custom_call.1} parent=1 // pred_check
      _
    $region31: #{tpu_custom_call.1} parent=1 // pred_check_branch
      %326 = sbr.rel (0) target = $region33
    $region32: #{tpu_custom_call.1} parent=1 // pred_region
      %327 = dma.done [#allocation5], 128
    $region33: #{tpu_custom_call.1} parent=1 // pred_fallthru
      _
    %328 = vsyncpa [#allocation4], 1
    %329 = vsyncpa [#allocation7], 1
    %330 = vsyncpa [#allocation5], 1

</llo_original>
